<compile_context>
chip_gen: v7x
topology: tpu7x:2x2x1
jax: 0.10.0
libtpu: 0.0.40
codegen_flags: <defaults>
</compile_context>

<pallas_src>
import jax
import jax.numpy as jnp
from jax.experimental import pallas as pl
from jax.experimental.pallas import tpu as pltpu


def _sxf_linear3d_kernel(x_ref, w_ref, o_ref):
    """out[t, o] = sum_c x[c, t, :] @ w[c, :, o]   (f32 accumulation).

    x_ref : (C, tT, WH)  bf16 input tile (one batch element, tT time steps)
    w_ref : (C, WH, O)   bf16 precomputed weight (constant across the grid)
    o_ref : (tT, O)      f32 output tile
    """
    C = x_ref.shape[0]
    acc = jnp.dot(x_ref[0], w_ref[0], preferred_element_type=jnp.float32)
    for c in range(1, C):   # C is small and static -> unrolled MXU matmuls
        acc = acc + jnp.dot(x_ref[c], w_ref[c],
                            preferred_element_type=jnp.float32)
    o_ref[...] = acc.astype(o_ref.dtype)


def _pick_tt(T, C, WH, itemsize, target_bytes=2 << 20):
    """Largest T-tile (multiple of 8) whose x block is ~2 MiB (<=T)."""
    rows = target_bytes // max(1, C * WH * itemsize)
    rows = max(8, (rows // 8) * 8)
    return T if rows >= T else rows


def spatial_x_feature_linear3d(x, spatial, features, bias=None,
                               *, compute_dtype=jnp.bfloat16):
    """x: (N, C, T, W, H); spatial: (O, 1, 1, W, H); features: (O, C, 1, 1, 1);
    bias: (O,) or None.  Returns (N, T, O) float32."""
    N, C, T, W, H = x.shape
    O = spatial.shape[0]
    WH = W * H

    # ---- weight precompute (tiny: O*C*W*H elements, done once) -------------
    # positive=True clamps EACH factor at zero separately (NOT relu of the
    # product), matching torch's positive() applied to spatial and features.
    s2 = jnp.maximum(spatial.reshape(O, WH), 0.0)            # (O, WH)
    f2 = jnp.maximum(features.reshape(O, C), 0.0)            # (O, C)
    w = f2[:, :, None] * s2[:, None, :]                      # (O, C, WH)
    w = jnp.transpose(w, (1, 2, 0)).astype(compute_dtype)    # (C, WH, O)
    # TODO(synk): normalize=True (spatial L2-normalization) is not implemented
    # here; the module under test uses normalize=False.

    # ---- input: free reshape only (no transpose, no extra HBM pass) --------
    xr = x.reshape(N, C, T, WH).astype(compute_dtype)
    # NOTE: the bf16 cast is an extra elementwise pass only in this standalone
    # script; in a real model x arrives bf16 (or the cast fuses upstream).

    tT = _pick_tt(T, C, WH, jnp.dtype(compute_dtype).itemsize)
    grid = (N, pl.cdiv(T, tT))

    cost = pl.CostEstimate(
        flops=2 * N * T * C * WH * O,
        transcendentals=0,
        bytes_accessed=(xr.size * xr.dtype.itemsize
                        + w.size * w.dtype.itemsize
                        + N * T * O * 4),
    )

    out = pl.pallas_call(
        _sxf_linear3d_kernel,
        out_shape=jax.ShapeDtypeStruct((N, T, O), jnp.float32),
        grid=grid,
        in_specs=[
            # (None, ...) squeezes the batch dim; last two block dims are
            # (tT, WH): tT is a multiple of 8 or equals T, WH is the full dim.
            pl.BlockSpec((None, C, tT, WH), lambda n, ti: (n, 0, ti, 0)),
            # Whole weight, constant block index -> fetched once, stays in VMEM.
            pl.BlockSpec((C, WH, O), lambda n, ti: (0, 0, 0)),
        ],
        out_specs=pl.BlockSpec((None, tT, O), lambda n, ti: (n, ti, 0)),
        compiler_params=pltpu.CompilerParams(
            dimension_semantics=("parallel", "parallel")),
        cost_estimate=cost,
    )(xr, w)

    if bias is not None:
        out = out + bias[None, None, :]   # trivial XLA add on (N, T, O)
    return out


def _reference(x, spatial, features, bias):
    """Pure-JAX f32 reference matching the PyTorch forward."""
    N, C, T, W, H = x.shape
    O = spatial.shape[0]
    w = jnp.maximum(spatial, 0.0) * jnp.maximum(features, 0.0)   # (O,C,1,W,H)
    w2 = w.reshape(O, C * W * H)
    x2 = jnp.transpose(x, (0, 2, 1, 3, 4)).reshape(N * T, C * W * H)
    out = x2 @ w2.T + bias[None, :]
    return out.reshape(N, T, O)


if __name__ == "__main__":
    # in_shape = (c, t, w, h) = (4, 8, 16, 16), outdims = 16, batch N = 2
    N, C, T, W, H = 2, 4, 8, 16, 16
    O = 16

    key = jax.random.PRNGKey(0)
    kx, ks, kf = jax.random.split(key, 3)

    x = jax.random.normal(kx, (N, C, T, W, H), dtype=jnp.float32)
    # initialize(): params ~ N(0, 0.001), bias = 0
    init_noise = 1e-3
    spatial = init_noise * jax.random.normal(ks, (O, 1, 1, W, H), dtype=jnp.float32)
    features = init_noise * jax.random.normal(kf, (O, C, 1, 1, 1), dtype=jnp.float32)
    bias = jnp.zeros((O,), dtype=jnp.float32)

    out = spatial_x_feature_linear3d(x, spatial, features, bias)
    out = jax.block_until_ready(out)

    ref = _reference(x, spatial, features, bias)
    assert out.shape == (N, T, O), out.shape
    # bf16 inputs with f32 accumulation -> loosened tolerance vs f32 reference.
    max_err = float(jnp.max(jnp.abs(out - ref)))
    assert jnp.allclose(out, ref, rtol=2e-2, atol=1e-6), max_err

    print("KERNEL_OK")
</pallas_src>

<mosaic_0001>
module attributes {stable_mosaic.version = 11 : i64} {
  func.func @_sxf_linear3d_kernel(%arg0: i32, %arg1: i32, %arg2: memref<1x4x8x256xbf16, #tpu.memory_space<vmem>>, %arg3: memref<4x256x16xbf16, #tpu.memory_space<vmem>>, %arg4: memref<1x8x16xf32, #tpu.memory_space<vmem>>) attributes {dimension_semantics = [#tpu.dimension_semantics<parallel>, #tpu.dimension_semantics<parallel>], iteration_bounds = array<i64: 2, 1>, scalar_prefetch = 0 : i64, scratch_operands = 0 : i64, tpu.core_type = #tpu.core_type<tc>, window_params = [{transform_indices = @transform_0, window_bounds = array<i64: 1, 4, 8, 256>}, {pipeline_mode = #tpu.pipeline_mode<synchronous>, transform_indices = @transform_1, window_bounds = array<i64: 4, 256, 16>}, {transform_indices = @transform_2, window_bounds = array<i64: 1, 8, 16>}]} {
    %c0 = arith.constant 0 : index
    %c0_0 = arith.constant 0 : index
    %c0_1 = arith.constant 0 : index
    %c0_2 = arith.constant 0 : index
    %0 = vector.load %arg2[%c0, %c0_0, %c0_1, %c0_2] : memref<1x4x8x256xbf16, #tpu.memory_space<vmem>>, vector<1x1x8x256xbf16>
    %1 = vector.shape_cast %0 : vector<1x1x8x256xbf16> to vector<8x256xbf16>
    %c0_3 = arith.constant 0 : index
    %c0_4 = arith.constant 0 : index
    %c0_5 = arith.constant 0 : index
    %2 = vector.load %arg3[%c0_3, %c0_4, %c0_5] : memref<4x256x16xbf16, #tpu.memory_space<vmem>>, vector<1x256x16xbf16>
    %3 = vector.shape_cast %2 : vector<1x256x16xbf16> to vector<256x16xbf16>
    %cst = arith.constant dense<0.000000e+00> : vector<8x16xf32>
    %4 = tpu.matmul %1, %3, %cst {dimension_numbers = #tpu.dot_dimension_numbers<[1], [0], [0], [1], [0, 0, 1, 1], [], []>} : vector<8x256xbf16>, vector<256x16xbf16>, vector<8x16xf32> -> vector<8x16xf32>
    %c0_6 = arith.constant 0 : index
    %c1 = arith.constant 1 : index
    %c0_7 = arith.constant 0 : index
    %c0_8 = arith.constant 0 : index
    %5 = vector.load %arg2[%c0_6, %c1, %c0_7, %c0_8] : memref<1x4x8x256xbf16, #tpu.memory_space<vmem>>, vector<1x1x8x256xbf16>
    %6 = vector.shape_cast %5 : vector<1x1x8x256xbf16> to vector<8x256xbf16>
    %c1_9 = arith.constant 1 : index
    %c0_10 = arith.constant 0 : index
    %c0_11 = arith.constant 0 : index
    %7 = vector.load %arg3[%c1_9, %c0_10, %c0_11] : memref<4x256x16xbf16, #tpu.memory_space<vmem>>, vector<1x256x16xbf16>
    %8 = vector.shape_cast %7 : vector<1x256x16xbf16> to vector<256x16xbf16>
    %cst_12 = arith.constant dense<0.000000e+00> : vector<8x16xf32>
    %9 = tpu.matmul %6, %8, %cst_12 {dimension_numbers = #tpu.dot_dimension_numbers<[1], [0], [0], [1], [0, 0, 1, 1], [], []>} : vector<8x256xbf16>, vector<256x16xbf16>, vector<8x16xf32> -> vector<8x16xf32>
    %10 = arith.addf %4, %9 : vector<8x16xf32>
    %c0_13 = arith.constant 0 : index
    %c2 = arith.constant 2 : index
    %c0_14 = arith.constant 0 : index
    %c0_15 = arith.constant 0 : index
    %11 = vector.load %arg2[%c0_13, %c2, %c0_14, %c0_15] : memref<1x4x8x256xbf16, #tpu.memory_space<vmem>>, vector<1x1x8x256xbf16>
    %12 = vector.shape_cast %11 : vector<1x1x8x256xbf16> to vector<8x256xbf16>
    %c2_16 = arith.constant 2 : index
    %c0_17 = arith.constant 0 : index
    %c0_18 = arith.constant 0 : index
    %13 = vector.load %arg3[%c2_16, %c0_17, %c0_18] : memref<4x256x16xbf16, #tpu.memory_space<vmem>>, vector<1x256x16xbf16>
    %14 = vector.shape_cast %13 : vector<1x256x16xbf16> to vector<256x16xbf16>
    %cst_19 = arith.constant dense<0.000000e+00> : vector<8x16xf32>
    %15 = tpu.matmul %12, %14, %cst_19 {dimension_numbers = #tpu.dot_dimension_numbers<[1], [0], [0], [1], [0, 0, 1, 1], [], []>} : vector<8x256xbf16>, vector<256x16xbf16>, vector<8x16xf32> -> vector<8x16xf32>
    %16 = arith.addf %10, %15 : vector<8x16xf32>
    %c0_20 = arith.constant 0 : index
    %c3 = arith.constant 3 : index
    %c0_21 = arith.constant 0 : index
    %c0_22 = arith.constant 0 : index
    %17 = vector.load %arg2[%c0_20, %c3, %c0_21, %c0_22] : memref<1x4x8x256xbf16, #tpu.memory_space<vmem>>, vector<1x1x8x256xbf16>
    %18 = vector.shape_cast %17 : vector<1x1x8x256xbf16> to vector<8x256xbf16>
    %c3_23 = arith.constant 3 : index
    %c0_24 = arith.constant 0 : index
    %c0_25 = arith.constant 0 : index
    %19 = vector.load %arg3[%c3_23, %c0_24, %c0_25] : memref<4x256x16xbf16, #tpu.memory_space<vmem>>, vector<1x256x16xbf16>
    %20 = vector.shape_cast %19 : vector<1x256x16xbf16> to vector<256x16xbf16>
    %cst_26 = arith.constant dense<0.000000e+00> : vector<8x16xf32>
    %21 = tpu.matmul %18, %20, %cst_26 {dimension_numbers = #tpu.dot_dimension_numbers<[1], [0], [0], [1], [0, 0, 1, 1], [], []>} : vector<8x256xbf16>, vector<256x16xbf16>, vector<8x16xf32> -> vector<8x16xf32>
    %22 = arith.addf %16, %21 : vector<8x16xf32>
    %c0_27 = arith.constant 0 : index
    %c0_28 = arith.constant 0 : index
    %c0_29 = arith.constant 0 : index
    %23 = vector.load %arg4[%c0_27, %c0_28, %c0_29] : memref<1x8x16xf32, #tpu.memory_space<vmem>>, vector<1x8x16xf32>
    %24 = vector.shape_cast %23 : vector<1x8x16xf32> to vector<8x16xf32>
    %25 = vector.shape_cast %22 : vector<8x16xf32> to vector<1x8x16xf32>
    tpu.vector_store %arg4[%c0_27, %c0_28, %c0_29], %25 {strides = array<i32>} : memref<1x8x16xf32, #tpu.memory_space<vmem>>, vector<1x8x16xf32>,
    return
  }
  func.func @transform_0(%arg0: i32, %arg1: i32) -> (i32, i32, i32, i32) {
    %c0_i32 = arith.constant 0 : i32
    %c0_i32_0 = arith.constant 0 : i32
    %c0_i32_1 = arith.constant 0 : i32
    return %arg0, %c0_i32, %arg1, %c0_i32_0 : i32, i32, i32, i32
  }
  func.func @transform_1(%arg0: i32, %arg1: i32) -> (i32, i32, i32) {
    %c0_i32 = arith.constant 0 : i32
    %c0_i32_0 = arith.constant 0 : i32
    %c0_i32_1 = arith.constant 0 : i32
    %c0_i32_2 = arith.constant 0 : i32
    return %c0_i32, %c0_i32_0, %c0_i32_1 : i32, i32, i32
  }
  func.func @transform_2(%arg0: i32, %arg1: i32) -> (i32, i32, i32) {
    %c0_i32 = arith.constant 0 : i32
    %c0_i32_0 = arith.constant 0 : i32
    return %arg0, %arg1, %c0_i32 : i32, i32, i32
  }
}

</mosaic_0001>

<llo_original>
// kernel: tpu_custom_call.1
$region0: #{tpu_custom_call.1}
  #allocation0 [shape = 'u32[]', space=smem, size = 0x4, offset = 0x4, fixed_abs, tag = 'smem constant byte address 0x4 - core index']
  #allocation1 [shape = 'u32[144,128]{1,0:T(1,128)}', space=vmem, size = 0x12000, scoped, tag = 'internal scratch']
  %s0 = inlined_call_operand.vmem [shape: bf16[2,4,8,256], index: 0, kind: input, shape index: {}]
  %s1 = inlined_call_operand.vmem [shape: bf16[4,256,16], index: 1, kind: input, shape index: {}]
  %s2 = inlined_call_operand.hbm [shape: f32[2,8,16], index: 2, kind: output, shape index: {}]
  %s3 = sld [smem:[#allocation0]]
  $region41: #{tpu_custom_call.1} parent=0
    _
  %s5 = ssub.s32 1, %s3
  %s6 = scalar_select 0, %s5, %s3
  $region1: #{tpu_custom_call.1} parent=0
    #allocation2 [shape = 'u8[8192]{0}', space=vmem, size = 0x2000, scoped, tag = 'output window, operand 0']
    #allocation3 [shape = 's32[2]{0}', space=sflag, size = 0x8, scoped, tag = 'scoped memory for tpu_custom_call.1']
    %7 = vsyncpa [#allocation3], 0
    %s8 = scalar_lea.sflag [#allocation3], 1
    %9 = vsyncpa %s8, 0
    loop: start=0, step=1, limit=4
    $region2: #{tpu_custom_call.1} parent=1 // loop_pre_header
      _
    $region3: #{tpu_custom_call.1} parent=1 // loop_header
      %s11 = sphi 0, %s15
      %p12 = scmp.ge.s32.totalorder %s11, 4
      %s18 = sphi 0, %s30
      %s19 = sphi 0, %s26
      %s20 = sphi 0, %s18
      %s21 = sphi 0, %s19
      %s22 = sphi 0, %s20
      %s23 = sphi 0, %s21
      %s35 = sphi 0, %s37
      %s38 = sphi 0, %s35
      %s39 = sphi 0, %s38
      %s55 = sphi 0, %s39
      %s59 = sphi 0, %s59
      %s61 = sphi 0, %s59
      %s62 = sphi 0, %s61
      %s76 = sphi 0, %s62
      %s84 = sphi 0, %s86
      %s87 = sphi 0, %s84
      %s88 = sphi 0, %s87
      %s104 = sphi 0, %s88
    $region4: #{tpu_custom_call.1} parent=1 // loop_header_branch
      %14 = sbr.rel (%p12) target = $region8
    $region5: #{tpu_custom_call.1} parent=1 // loop_body
      %s16 = ssub.s32 %s11, 1
      %s17 = ssub.s32 %s11, 2
      %s24 = sadd.s32 1, %s19
      %p25 = scmp.ge.s32.totalorder %s24, 1
      %s26 = scalar_select %p25, 0, %s24
      %s27 = sadd.s32 1, %s18
      %s28 = scalar_select %p25, %s27, %s18
      %p29 = scmp.ge.s32.totalorder %s28, 2
      %s30 = scalar_select %p29, 0, %s28
      %s31 = ssub.s32 %s18, %s30
      %s32 = ssub.s32 %s19, %s26
      %s33 = sor.u32 %s31, %s32
      %p34 = scmp.eq.s32.totalorder %s33, 0
      %s36 = sadd.s32 %s35, 1
      %s37 = scalar_select %p34, %s35, %s36
      %p40 = pneg %p34
      %p41 = scmp.eq.s32.totalorder %s11, 1
      %p42 = por %p40, %p41
      %p43 = scmp.ne.s32.totalorder %s35, %s38
      %p44 = scmp.eq.s32.totalorder %s11, 0
      %p45 = por %p43, %p44
      %p46 = scmp.ne.s32.totalorder %s35, %s38
      %p47 = scmp.eq.s32.totalorder %s16, 1
      %p48 = por %p46, %p47
      %p49 = scmp.ne.s32.totalorder %s38, %s39
      %p50 = scmp.eq.s32.totalorder %s16, 0
      %p51 = por %p49, %p50
      %p52 = scmp.ne.s32.totalorder %s38, %s39
      %p53 = scmp.eq.s32.totalorder %s17, 1
      %p54 = por %p52, %p53
      %p56 = scmp.ne.s32.totalorder %s39, %s55
      %p57 = scmp.eq.s32.totalorder %s17, 0
      %p58 = por %p56, %p57
      %s60 = sadd.s32 %s59, 1
      %p63 = scmp.eq.s32.totalorder %s11, 1
      %p64 = scmp.ne.s32.totalorder %s59, %s61
      %p65 = scmp.eq.s32.totalorder %s11, 0
      %p66 = por %p64, %p65
      %p67 = scmp.ne.s32.totalorder %s59, %s61
      %p68 = scmp.eq.s32.totalorder %s16, 1
      %p69 = por %p67, %p68
      %p70 = scmp.ne.s32.totalorder %s61, %s62
      %p71 = scmp.eq.s32.totalorder %s16, 0
      %p72 = por %p70, %p71
      %p73 = scmp.ne.s32.totalorder %s61, %s62
      %p74 = scmp.eq.s32.totalorder %s17, 1
      %p75 = por %p73, %p74
      %p77 = scmp.ne.s32.totalorder %s62, %s76
      %p78 = scmp.eq.s32.totalorder %s17, 0
      %p79 = por %p77, %p78
      %s80 = ssub.s32 %s18, %s30
      %s81 = ssub.s32 %s19, %s26
      %s82 = sor.u32 %s80, %s81
      %p83 = scmp.eq.s32.totalorder %s82, 0
      %s85 = sadd.s32 %s84, 1
      %s86 = scalar_select %p83, %s84, %s85
      %p89 = pneg %p83
      %p90 = scmp.eq.s32.totalorder %s11, 1
      %p91 = por %p89, %p90
      %p92 = scmp.ne.s32.totalorder %s84, %s87
      %p93 = scmp.eq.s32.totalorder %s11, 0
      %p94 = por %p92, %p93
      %p95 = scmp.ne.s32.totalorder %s84, %s87
      %p96 = scmp.eq.s32.totalorder %s16, 1
      %p97 = por %p95, %p96
      %p98 = scmp.ne.s32.totalorder %s87, %s88
      %p99 = scmp.eq.s32.totalorder %s16, 0
      %p100 = por %p98, %p99
      %p101 = scmp.ne.s32.totalorder %s87, %s88
      %p102 = scmp.eq.s32.totalorder %s17, 1
      %p103 = por %p101, %p102
      %p105 = scmp.ne.s32.totalorder %s88, %s104
      %p106 = scmp.eq.s32.totalorder %s17, 0
      %p107 = por %p105, %p106
      %p108 = scmp.le.s32.totalorder 1, %s11
      %p109 = scmp.lt.s32.totalorder %s11, 3
      %p110 = pnand %p108, %p109
      %p111 = pneg %p110
      // Predicated region
      $region9: #{tpu_custom_call.1} parent=5 // pred_check
        _
      $region10: #{tpu_custom_call.1} parent=5 // pred_check_branch
        %113 = sbr.rel (%p110) target = $region12
      $region11: #{tpu_custom_call.1} parent=5 // pred_region
        %s114 = ssub.s32 %s11, 1
        // Predicated region
        $region13: #{tpu_custom_call.1} parent=11 // pred_check
          %p115 = pneg %p72
        $region14: #{tpu_custom_call.1} parent=11 // pred_check_branch
          %117 = sbr.rel (%p115) target = $region16
        $region15: #{tpu_custom_call.1} parent=11 // pred_region
          _
        $region16: #{tpu_custom_call.1} parent=11 // pred_fallthru
          _
      $region12: #{tpu_custom_call.1} parent=5 // pred_fallthru
        _
      %p118 = scmp.lt.s32.totalorder %s11, 2
      // Predicated region
      $region17: #{tpu_custom_call.1} parent=5 // pred_check
        %p119 = pneg %p118
      $region18: #{tpu_custom_call.1} parent=5 // pred_check_branch
        %121 = sbr.rel (%p119) target = $region20
      $region19: #{tpu_custom_call.1} parent=5 // pred_region
        // Predicated region
        $region21: #{tpu_custom_call.1} parent=19 // pred_check
          %p122 = pneg %p45
        $region22: #{tpu_custom_call.1} parent=19 // pred_check_branch
          %124 = sbr.rel (%p122) target = $region24
        $region23: #{tpu_custom_call.1} parent=19 // pred_region
          %p125 = scmp.lt.s32.totalorder %s18, 1
          %s126 = scalar_select %p125, %s18, 1
          %p127 = scmp.lt.s32.totalorder %s19, 0
          %s128 = scalar_select %p127, %s19, 0
          %s129 = smul.addr %s128, 2
          %s130 = smul.addr %s126, 8
          %s131 = sadd.s32 %s129, %s130
          %s132 = smul.addr %s131, 4
          %s133 = scalar_lea.vmem %s0, %s132
        $region24: #{tpu_custom_call.1} parent=19 // pred_fallthru
          _
      $region20: #{tpu_custom_call.1} parent=5 // pred_fallthru
        _
      %p134 = scmp.le.s32.totalorder 1, %s11
      %p135 = scmp.lt.s32.totalorder %s11, 3
      %p136 = pnand %p134, %p135
      %p137 = pneg %p136
      // Predicated region
      $region25: #{tpu_custom_call.1} parent=5 // pred_check
        _
      $region26: #{tpu_custom_call.1} parent=5 // pred_check_branch
        %139 = sbr.rel (%p136) target = $region28
      $region27: #{tpu_custom_call.1} parent=5 // pred_region
        %s140 = ssub.s32 %s11, 1
        %p141 = scmp.lt.s32.totalorder %s20, 1
        %s142 = scalar_select %p141, %s20, 1
        %p143 = scmp.lt.s32.totalorder %s21, 0
        %s144 = scalar_select %p143, %s21, 0
        %s145 = smul.addr %s144, 2
        %s146 = smul.addr %s142, 8
        %s147 = sadd.s32 %s145, %s146
        %s148 = smul.addr %s147, 4
        %s149 = scalar_lea.vmem %s0, %s148
        %p150 = pneg %p51
        %p151 = pneg %p48
        %p152 = pneg %p72
        %p153 = pneg %p69
        %p154 = pneg %p100
        %p155 = pneg %p97
        %s156 = sand.u32 %s87, 1
        %s157 = scalar_lea.sflag [#allocation3], %s156
        %s158 = sand.u32 %s87, 1
        %s159 = smul.addr %s158, 8
        %s160 = scalar_lea.vmem [#allocation2], %s159
        %p161 = scmp.lt.s32.totalorder %s20, 1
        %s162 = scalar_select %p161, %s20, 1
        %p163 = scmp.lt.s32.totalorder %s21, 0
        %s164 = scalar_select %p163, %s21, 0
        %s165 = smul.addr %s164, 2
        %s166 = smul.addr %s162, 8
        %s167 = sadd.s32 %s165, %s166
        %s168 = smul.addr %s167, 4
        %s169 = scalar_lea.vmem %s0, %s168
        %v171 = vld [vmem:[%s169] sm:$0xff]
        %v172 = vld [vmem:[%s1] sm:$0xf]
        %v173 = vld [vmem:[%s1 + $0x4] sm:$0xf]
        %v174 = vld [vmem:[%s1 + $0x8] sm:$0xf]
        %v175 = vld [vmem:[%s1 + $0xc] sm:$0xf]
        %v176 = vld [vmem:[%s1 + $0x10] sm:$0xf]
        %v177 = vld [vmem:[%s1 + $0x14] sm:$0xf]
        %v178 = vld [vmem:[%s1 + $0x18] sm:$0xf]
        %v179 = vld [vmem:[%s1 + $0x1c] sm:$0xf]
        %v180 = vld [vmem:[%s1 + $0x20] sm:$0xf]
        %v181 = vld [vmem:[%s1 + $0x24] sm:$0xf]
        %v182 = vld [vmem:[%s1 + $0x28] sm:$0xf]
        %v183 = vld [vmem:[%s1 + $0x2c] sm:$0xf]
        %v184 = vld [vmem:[%s1 + $0x30] sm:$0xf]
        %v185 = vld [vmem:[%s1 + $0x34] sm:$0xf]
        %v186 = vld [vmem:[%s1 + $0x38] sm:$0xf]
        %v187 = vld [vmem:[%s1 + $0x3c] sm:$0xf]
        %v188 = vld [vmem:[%s1 + $0x40] sm:$0xf]
        %v189 = vld [vmem:[%s1 + $0x44] sm:$0xf]
        %v190 = vld [vmem:[%s1 + $0x48] sm:$0xf]
        %v191 = vld [vmem:[%s1 + $0x4c] sm:$0xf]
        %v192 = vld [vmem:[%s1 + $0x50] sm:$0xf]
        %v193 = vld [vmem:[%s1 + $0x54] sm:$0xf]
        %v194 = vld [vmem:[%s1 + $0x58] sm:$0xf]
        %v195 = vld [vmem:[%s1 + $0x5c] sm:$0xf]
        %v196 = vld [vmem:[%s1 + $0x60] sm:$0xf]
        %v197 = vld [vmem:[%s1 + $0x64] sm:$0xf]
        %v198 = vld [vmem:[%s1 + $0x68] sm:$0xf]
        %v199 = vld [vmem:[%s1 + $0x6c] sm:$0xf]
        %v200 = vld [vmem:[%s1 + $0x70] sm:$0xf]
        %v201 = vld [vmem:[%s1 + $0x74] sm:$0xf]
        %v202 = vld [vmem:[%s1 + $0x78] sm:$0xf]
        %v203 = vld [vmem:[%s1 + $0x7c] sm:$0xf]
        %s204 = scalar_lea.vmem %s169, 8
        %v205 = vld [vmem:[%s204] sm:$0xff]
        %s206 = scalar_lea.vmem %s1, 128
        %v207 = vld [vmem:[%s206] sm:$0xf]
        %v208 = vld [vmem:[%s206 + $0x4] sm:$0xf]
        %v209 = vld [vmem:[%s206 + $0x8] sm:$0xf]
        %v210 = vld [vmem:[%s206 + $0xc] sm:$0xf]
        %v211 = vld [vmem:[%s206 + $0x10] sm:$0xf]
        %v212 = vld [vmem:[%s206 + $0x14] sm:$0xf]
        %v213 = vld [vmem:[%s206 + $0x18] sm:$0xf]
        %v214 = vld [vmem:[%s206 + $0x1c] sm:$0xf]
        %v215 = vld [vmem:[%s206 + $0x20] sm:$0xf]
        %v216 = vld [vmem:[%s206 + $0x24] sm:$0xf]
        %v217 = vld [vmem:[%s206 + $0x28] sm:$0xf]
        %v218 = vld [vmem:[%s206 + $0x2c] sm:$0xf]
        %v219 = vld [vmem:[%s206 + $0x30] sm:$0xf]
        %v220 = vld [vmem:[%s206 + $0x34] sm:$0xf]
        %v221 = vld [vmem:[%s206 + $0x38] sm:$0xf]
        %v222 = vld [vmem:[%s206 + $0x3c] sm:$0xf]
        %v223 = vld [vmem:[%s206 + $0x40] sm:$0xf]
        %v224 = vld [vmem:[%s206 + $0x44] sm:$0xf]
        %v225 = vld [vmem:[%s206 + $0x48] sm:$0xf]
        %v226 = vld [vmem:[%s206 + $0x4c] sm:$0xf]
        %v227 = vld [vmem:[%s206 + $0x50] sm:$0xf]
        %v228 = vld [vmem:[%s206 + $0x54] sm:$0xf]
        %v229 = vld [vmem:[%s206 + $0x58] sm:$0xf]
        %v230 = vld [vmem:[%s206 + $0x5c] sm:$0xf]
        %v231 = vld [vmem:[%s206 + $0x60] sm:$0xf]
        %v232 = vld [vmem:[%s206 + $0x64] sm:$0xf]
        %v233 = vld [vmem:[%s206 + $0x68] sm:$0xf]
        %v234 = vld [vmem:[%s206 + $0x6c] sm:$0xf]
        %v235 = vld [vmem:[%s206 + $0x70] sm:$0xf]
        %v236 = vld [vmem:[%s206 + $0x74] sm:$0xf]
        %v237 = vld [vmem:[%s206 + $0x78] sm:$0xf]
        %v238 = vld [vmem:[%s206 + $0x7c] sm:$0xf]
        %v240 = vunpack.c.l.b16 %v205
        %v241 = vunpack.c.h.b16 %v205
        %v242 = vpack.c.b16 %v240, %v240
        %v243 = vpack.c.b16 %v241, %v241
        %v278 = vunpack.c.l.b16 %v207
        %v279 = vunpack.c.l.b16 %v208
        %v280 = vunpack.c.l.b16 %v209
        %v281 = vunpack.c.l.b16 %v210
        %v282 = vunpack.c.l.b16 %v211
        %v283 = vunpack.c.l.b16 %v212
        %v284 = vunpack.c.l.b16 %v213
        %v285 = vunpack.c.l.b16 %v214
        %v286 = vunpack.c.l.b16 %v215
        %v287 = vunpack.c.l.b16 %v216
        %v288 = vunpack.c.l.b16 %v217
        %v289 = vunpack.c.l.b16 %v218
        %v290 = vunpack.c.l.b16 %v219
        %v291 = vunpack.c.l.b16 %v220
        %v292 = vunpack.c.l.b16 %v221
        %v293 = vunpack.c.l.b16 %v222
        %v294 = vunpack.c.l.b16 %v223
        %v295 = vunpack.c.l.b16 %v224
        %v296 = vunpack.c.l.b16 %v225
        %v297 = vunpack.c.l.b16 %v226
        %v298 = vunpack.c.l.b16 %v227
        %v299 = vunpack.c.l.b16 %v228
        %v300 = vunpack.c.l.b16 %v229
        %v301 = vunpack.c.l.b16 %v230
        %v302 = vunpack.c.l.b16 %v231
        %v303 = vunpack.c.l.b16 %v232
        %v304 = vunpack.c.l.b16 %v233
        %v305 = vunpack.c.l.b16 %v234
        %v306 = vunpack.c.l.b16 %v235
        %v307 = vunpack.c.l.b16 %v236
        %v308 = vunpack.c.l.b16 %v237
        %v309 = vunpack.c.l.b16 %v238
        %v310 = vpack.c.b16 %v279, %v278
        %v311 = vpack.c.b16 %v281, %v280
        %v312 = vpack.c.b16 %v283, %v282
        %v313 = vpack.c.b16 %v285, %v284
        %v314 = vpack.c.b16 %v287, %v286
        %v315 = vpack.c.b16 %v289, %v288
        %v316 = vpack.c.b16 %v291, %v290
        %v317 = vpack.c.b16 %v293, %v292
        %v318 = vpack.c.b16 %v295, %v294
        %v319 = vpack.c.b16 %v297, %v296
        %v320 = vpack.c.b16 %v299, %v298
        %v321 = vpack.c.b16 %v301, %v300
        %v322 = vpack.c.b16 %v303, %v302
        %v323 = vpack.c.b16 %v305, %v304
        %v324 = vpack.c.b16 %v307, %v306
        %v325 = vpack.c.b16 %v309, %v308
        %342 = vmatprep.subr.bf16.mxu0 0
        %343 = vmatpush1.bf16.msra.mxu0 %v310
        %344 = vmatprep.subr.bf16.mxu0 0
        %345 = vmatpush1.bf16.msra.mxu0 %v311
        %346 = vmatprep.subr.bf16.mxu0 0
        %347 = vmatpush1.bf16.msra.mxu0 %v312
        %348 = vmatprep.subr.bf16.mxu0 0
        %349 = vmatpush1.bf16.msra.mxu0 %v313
        %350 = vmatprep.subr.bf16.mxu0 0
        %351 = vmatpush1.bf16.msra.mxu0 %v314
        %352 = vmatprep.subr.bf16.mxu0 0
        %353 = vmatpush1.bf16.msra.mxu0 %v315
        %354 = vmatprep.subr.bf16.mxu0 0
        %355 = vmatpush1.bf16.msra.mxu0 %v316
        %356 = vmatprep.subr.bf16.mxu0 0
        %357 = vmatpush1.bf16.msra.mxu0 %v317
        %358 = vmatprep.subr.bf16.mxu0 0
        %359 = vmatpush1.bf16.msra.mxu0 %v318
        %360 = vmatprep.subr.bf16.mxu0 0
        %361 = vmatpush1.bf16.msra.mxu0 %v319
        %362 = vmatprep.subr.bf16.mxu0 0
        %363 = vmatpush1.bf16.msra.mxu0 %v320
        %364 = vmatprep.subr.bf16.mxu0 0
        %365 = vmatpush1.bf16.msra.mxu0 %v321
        %366 = vmatprep.subr.bf16.mxu0 0
        %367 = vmatpush1.bf16.msra.mxu0 %v322
        %368 = vmatprep.subr.bf16.mxu0 0
        %369 = vmatpush1.bf16.msra.mxu0 %v323
        %370 = vmatprep.subr.bf16.mxu0 0
        %371 = vmatpush1.bf16.msra.mxu0 %v324
        %372 = vmatprep.subr.bf16.mxu0 0
        %373 = vmatpush1.bf16.msra.mxu0 %v325
        %374 = vmatprep.mubr.bf16.mxu0 %v243
        %375 = vmatmul.mubr.bf16.gmra.mrb[0].mxu0 %v242
        %v376 = vpop.f32.mrb[0].mxu0
        %v377 = vadd.f32 0.0, %v376
        %v378 = vpop.f32.mrb[0].mxu0
        %v379 = vpop.f32.mrb[0].mxu0
        %v380 = vpop.f32.mrb[0].mxu0
        %381 = vdwg.mxu0
        %v383 = vunpack.c.l.b16 %v171
        %v384 = vunpack.c.h.b16 %v171
        %v385 = vpack.c.b16 %v383, %v383
        %v386 = vpack.c.b16 %v384, %v384
        %v421 = vunpack.c.l.b16 %v172
        %v422 = vunpack.c.l.b16 %v173
        %v423 = vunpack.c.l.b16 %v174
        %v424 = vunpack.c.l.b16 %v175
        %v425 = vunpack.c.l.b16 %v176
        %v426 = vunpack.c.l.b16 %v177
        %v427 = vunpack.c.l.b16 %v178
        %v428 = vunpack.c.l.b16 %v179
        %v429 = vunpack.c.l.b16 %v180
        %v430 = vunpack.c.l.b16 %v181
        %v431 = vunpack.c.l.b16 %v182
        %v432 = vunpack.c.l.b16 %v183
        %v433 = vunpack.c.l.b16 %v184
        %v434 = vunpack.c.l.b16 %v185
        %v435 = vunpack.c.l.b16 %v186
        %v436 = vunpack.c.l.b16 %v187
        %v437 = vunpack.c.l.b16 %v188
        %v438 = vunpack.c.l.b16 %v189
        %v439 = vunpack.c.l.b16 %v190
        %v440 = vunpack.c.l.b16 %v191
        %v441 = vunpack.c.l.b16 %v192
        %v442 = vunpack.c.l.b16 %v193
        %v443 = vunpack.c.l.b16 %v194
        %v444 = vunpack.c.l.b16 %v195
        %v445 = vunpack.c.l.b16 %v196
        %v446 = vunpack.c.l.b16 %v197
        %v447 = vunpack.c.l.b16 %v198
        %v448 = vunpack.c.l.b16 %v199
        %v449 = vunpack.c.l.b16 %v200
        %v450 = vunpack.c.l.b16 %v201
        %v451 = vunpack.c.l.b16 %v202
        %v452 = vunpack.c.l.b16 %v203
        %v453 = vpack.c.b16 %v422, %v421
        %v454 = vpack.c.b16 %v424, %v423
        %v455 = vpack.c.b16 %v426, %v425
        %v456 = vpack.c.b16 %v428, %v427
        %v457 = vpack.c.b16 %v430, %v429
        %v458 = vpack.c.b16 %v432, %v431
        %v459 = vpack.c.b16 %v434, %v433
        %v460 = vpack.c.b16 %v436, %v435
        %v461 = vpack.c.b16 %v438, %v437
        %v462 = vpack.c.b16 %v440, %v439
        %v463 = vpack.c.b16 %v442, %v441
        %v464 = vpack.c.b16 %v444, %v443
        %v465 = vpack.c.b16 %v446, %v445
        %v466 = vpack.c.b16 %v448, %v447
        %v467 = vpack.c.b16 %v450, %v449
        %v468 = vpack.c.b16 %v452, %v451
        %485 = vmatprep.subr.bf16.mxu0 0
        %486 = vmatpush1.bf16.msra.mxu0 %v453
        %487 = vmatprep.subr.bf16.mxu0 0
        %488 = vmatpush1.bf16.msra.mxu0 %v454
        %489 = vmatprep.subr.bf16.mxu0 0
        %490 = vmatpush1.bf16.msra.mxu0 %v455
        %491 = vmatprep.subr.bf16.mxu0 0
        %492 = vmatpush1.bf16.msra.mxu0 %v456
        %493 = vmatprep.subr.bf16.mxu0 0
        %494 = vmatpush1.bf16.msra.mxu0 %v457
        %495 = vmatprep.subr.bf16.mxu0 0
        %496 = vmatpush1.bf16.msra.mxu0 %v458
        %497 = vmatprep.subr.bf16.mxu0 0
        %498 = vmatpush1.bf16.msra.mxu0 %v459
        %499 = vmatprep.subr.bf16.mxu0 0
        %500 = vmatpush1.bf16.msra.mxu0 %v460
        %501 = vmatprep.subr.bf16.mxu0 0
        %502 = vmatpush1.bf16.msra.mxu0 %v461
        %503 = vmatprep.subr.bf16.mxu0 0
        %504 = vmatpush1.bf16.msra.mxu0 %v462
        %505 = vmatprep.subr.bf16.mxu0 0
        %506 = vmatpush1.bf16.msra.mxu0 %v463
        %507 = vmatprep.subr.bf16.mxu0 0
        %508 = vmatpush1.bf16.msra.mxu0 %v464
        %509 = vmatprep.subr.bf16.mxu0 0
        %510 = vmatpush1.bf16.msra.mxu0 %v465
        %511 = vmatprep.subr.bf16.mxu0 0
        %512 = vmatpush1.bf16.msra.mxu0 %v466
        %513 = vmatprep.subr.bf16.mxu0 0
        %514 = vmatpush1.bf16.msra.mxu0 %v467
        %515 = vmatprep.subr.bf16.mxu0 0
        %516 = vmatpush1.bf16.msra.mxu0 %v468
        %517 = vmatprep.mubr.bf16.mxu0 %v386
        %518 = vmatmul.mubr.bf16.gmra.mrb[0].mxu0 %v385
        %v519 = vpop.f32.mrb[0].mxu0
        %v520 = vadd.f32 %v377, %v519
        %v521 = vpop.f32.mrb[0].mxu0
        %v522 = vpop.f32.mrb[0].mxu0
        %v523 = vpop.f32.mrb[0].mxu0
        %524 = vdwg.mxu0
        %s525 = scalar_lea.vmem %s169, 16
        %v526 = vld [vmem:[%s525] sm:$0xff]
        %s527 = scalar_lea.vmem %s1, 256
        %v528 = vld [vmem:[%s527] sm:$0xf]
        %v529 = vld [vmem:[%s527 + $0x4] sm:$0xf]
        %v530 = vld [vmem:[%s527 + $0x8] sm:$0xf]
        %v531 = vld [vmem:[%s527 + $0xc] sm:$0xf]
        %v532 = vld [vmem:[%s527 + $0x10] sm:$0xf]
        %v533 = vld [vmem:[%s527 + $0x14] sm:$0xf]
        %v534 = vld [vmem:[%s527 + $0x18] sm:$0xf]
        %v535 = vld [vmem:[%s527 + $0x1c] sm:$0xf]
        %v536 = vld [vmem:[%s527 + $0x20] sm:$0xf]
        %v537 = vld [vmem:[%s527 + $0x24] sm:$0xf]
        %v538 = vld [vmem:[%s527 + $0x28] sm:$0xf]
        %v539 = vld [vmem:[%s527 + $0x2c] sm:$0xf]
        %v540 = vld [vmem:[%s527 + $0x30] sm:$0xf]
        %v541 = vld [vmem:[%s527 + $0x34] sm:$0xf]
        %v542 = vld [vmem:[%s527 + $0x38] sm:$0xf]
        %v543 = vld [vmem:[%s527 + $0x3c] sm:$0xf]
        %v544 = vld [vmem:[%s527 + $0x40] sm:$0xf]
        %v545 = vld [vmem:[%s527 + $0x44] sm:$0xf]
        %v546 = vld [vmem:[%s527 + $0x48] sm:$0xf]
        %v547 = vld [vmem:[%s527 + $0x4c] sm:$0xf]
        %v548 = vld [vmem:[%s527 + $0x50] sm:$0xf]
        %v549 = vld [vmem:[%s527 + $0x54] sm:$0xf]
        %v550 = vld [vmem:[%s527 + $0x58] sm:$0xf]
        %v551 = vld [vmem:[%s527 + $0x5c] sm:$0xf]
        %v552 = vld [vmem:[%s527 + $0x60] sm:$0xf]
        %v553 = vld [vmem:[%s527 + $0x64] sm:$0xf]
        %v554 = vld [vmem:[%s527 + $0x68] sm:$0xf]
        %v555 = vld [vmem:[%s527 + $0x6c] sm:$0xf]
        %v556 = vld [vmem:[%s527 + $0x70] sm:$0xf]
        %v557 = vld [vmem:[%s527 + $0x74] sm:$0xf]
        %v558 = vld [vmem:[%s527 + $0x78] sm:$0xf]
        %v559 = vld [vmem:[%s527 + $0x7c] sm:$0xf]
        %v561 = vunpack.c.l.b16 %v526
        %v562 = vunpack.c.h.b16 %v526
        %v563 = vpack.c.b16 %v561, %v561
        %v564 = vpack.c.b16 %v562, %v562
        %v599 = vunpack.c.l.b16 %v528
        %v600 = vunpack.c.l.b16 %v529
        %v601 = vunpack.c.l.b16 %v530
        %v602 = vunpack.c.l.b16 %v531
        %v603 = vunpack.c.l.b16 %v532
        %v604 = vunpack.c.l.b16 %v533
        %v605 = vunpack.c.l.b16 %v534
        %v606 = vunpack.c.l.b16 %v535
        %v607 = vunpack.c.l.b16 %v536
        %v608 = vunpack.c.l.b16 %v537
        %v609 = vunpack.c.l.b16 %v538
        %v610 = vunpack.c.l.b16 %v539
        %v611 = vunpack.c.l.b16 %v540
        %v612 = vunpack.c.l.b16 %v541
        %v613 = vunpack.c.l.b16 %v542
        %v614 = vunpack.c.l.b16 %v543
        %v615 = vunpack.c.l.b16 %v544
        %v616 = vunpack.c.l.b16 %v545
        %v617 = vunpack.c.l.b16 %v546
        %v618 = vunpack.c.l.b16 %v547
        %v619 = vunpack.c.l.b16 %v548
        %v620 = vunpack.c.l.b16 %v549
        %v621 = vunpack.c.l.b16 %v550
        %v622 = vunpack.c.l.b16 %v551
        %v623 = vunpack.c.l.b16 %v552
        %v624 = vunpack.c.l.b16 %v553
        %v625 = vunpack.c.l.b16 %v554
        %v626 = vunpack.c.l.b16 %v555
        %v627 = vunpack.c.l.b16 %v556
        %v628 = vunpack.c.l.b16 %v557
        %v629 = vunpack.c.l.b16 %v558
        %v630 = vunpack.c.l.b16 %v559
        %v631 = vpack.c.b16 %v600, %v599
        %v632 = vpack.c.b16 %v602, %v601
        %v633 = vpack.c.b16 %v604, %v603
        %v634 = vpack.c.b16 %v606, %v605
        %v635 = vpack.c.b16 %v608, %v607
        %v636 = vpack.c.b16 %v610, %v609
        %v637 = vpack.c.b16 %v612, %v611
        %v638 = vpack.c.b16 %v614, %v613
        %v639 = vpack.c.b16 %v616, %v615
        %v640 = vpack.c.b16 %v618, %v617
        %v641 = vpack.c.b16 %v620, %v619
        %v642 = vpack.c.b16 %v622, %v621
        %v643 = vpack.c.b16 %v624, %v623
        %v644 = vpack.c.b16 %v626, %v625
        %v645 = vpack.c.b16 %v628, %v627
        %v646 = vpack.c.b16 %v630, %v629
        %663 = vmatprep.subr.bf16.mxu0 0
        %664 = vmatpush1.bf16.msra.mxu0 %v631
        %665 = vmatprep.subr.bf16.mxu0 0
        %666 = vmatpush1.bf16.msra.mxu0 %v632
        %667 = vmatprep.subr.bf16.mxu0 0
        %668 = vmatpush1.bf16.msra.mxu0 %v633
        %669 = vmatprep.subr.bf16.mxu0 0
        %670 = vmatpush1.bf16.msra.mxu0 %v634
        %671 = vmatprep.subr.bf16.mxu0 0
        %672 = vmatpush1.bf16.msra.mxu0 %v635
        %673 = vmatprep.subr.bf16.mxu0 0
        %674 = vmatpush1.bf16.msra.mxu0 %v636
        %675 = vmatprep.subr.bf16.mxu0 0
        %676 = vmatpush1.bf16.msra.mxu0 %v637
        %677 = vmatprep.subr.bf16.mxu0 0
        %678 = vmatpush1.bf16.msra.mxu0 %v638
        %679 = vmatprep.subr.bf16.mxu0 0
        %680 = vmatpush1.bf16.msra.mxu0 %v639
        %681 = vmatprep.subr.bf16.mxu0 0
        %682 = vmatpush1.bf16.msra.mxu0 %v640
        %683 = vmatprep.subr.bf16.mxu0 0
        %684 = vmatpush1.bf16.msra.mxu0 %v641
        %685 = vmatprep.subr.bf16.mxu0 0
        %686 = vmatpush1.bf16.msra.mxu0 %v642
        %687 = vmatprep.subr.bf16.mxu0 0
        %688 = vmatpush1.bf16.msra.mxu0 %v643
        %689 = vmatprep.subr.bf16.mxu0 0
        %690 = vmatpush1.bf16.msra.mxu0 %v644
        %691 = vmatprep.subr.bf16.mxu0 0
        %692 = vmatpush1.bf16.msra.mxu0 %v645
        %693 = vmatprep.subr.bf16.mxu0 0
        %694 = vmatpush1.bf16.msra.mxu0 %v646
        %695 = vmatprep.mubr.bf16.mxu0 %v564
        %696 = vmatmul.mubr.bf16.gmra.mrb[0].mxu0 %v563
        %v697 = vpop.f32.mrb[0].mxu0
        %v698 = vadd.f32 0.0, %v697
        %v699 = vpop.f32.mrb[0].mxu0
        %v700 = vpop.f32.mrb[0].mxu0
        %v701 = vpop.f32.mrb[0].mxu0
        %702 = vdwg.mxu0
        %v703 = vadd.f32 %v520, %v698
        %s704 = scalar_lea.vmem %s169, 24
        %v705 = vld [vmem:[%s704] sm:$0xff]
        %s706 = scalar_lea.vmem %s1, 384
        %v707 = vld [vmem:[%s706] sm:$0xf]
        %v708 = vld [vmem:[%s706 + $0x4] sm:$0xf]
        %v709 = vld [vmem:[%s706 + $0x8] sm:$0xf]
        %v710 = vld [vmem:[%s706 + $0xc] sm:$0xf]
        %v711 = vld [vmem:[%s706 + $0x10] sm:$0xf]
        %v712 = vld [vmem:[%s706 + $0x14] sm:$0xf]
        %v713 = vld [vmem:[%s706 + $0x18] sm:$0xf]
        %v714 = vld [vmem:[%s706 + $0x1c] sm:$0xf]
        %v715 = vld [vmem:[%s706 + $0x20] sm:$0xf]
        %v716 = vld [vmem:[%s706 + $0x24] sm:$0xf]
        %v717 = vld [vmem:[%s706 + $0x28] sm:$0xf]
        %v718 = vld [vmem:[%s706 + $0x2c] sm:$0xf]
        %v719 = vld [vmem:[%s706 + $0x30] sm:$0xf]
        %v720 = vld [vmem:[%s706 + $0x34] sm:$0xf]
        %v721 = vld [vmem:[%s706 + $0x38] sm:$0xf]
        %v722 = vld [vmem:[%s706 + $0x3c] sm:$0xf]
        %v723 = vld [vmem:[%s706 + $0x40] sm:$0xf]
        %v724 = vld [vmem:[%s706 + $0x44] sm:$0xf]
        %v725 = vld [vmem:[%s706 + $0x48] sm:$0xf]
        %v726 = vld [vmem:[%s706 + $0x4c] sm:$0xf]
        %v727 = vld [vmem:[%s706 + $0x50] sm:$0xf]
        %v728 = vld [vmem:[%s706 + $0x54] sm:$0xf]
        %v729 = vld [vmem:[%s706 + $0x58] sm:$0xf]
        %v730 = vld [vmem:[%s706 + $0x5c] sm:$0xf]
        %v731 = vld [vmem:[%s706 + $0x60] sm:$0xf]
        %v732 = vld [vmem:[%s706 + $0x64] sm:$0xf]
        %v733 = vld [vmem:[%s706 + $0x68] sm:$0xf]
        %v734 = vld [vmem:[%s706 + $0x6c] sm:$0xf]
        %v735 = vld [vmem:[%s706 + $0x70] sm:$0xf]
        %v736 = vld [vmem:[%s706 + $0x74] sm:$0xf]
        %v737 = vld [vmem:[%s706 + $0x78] sm:$0xf]
        %v738 = vld [vmem:[%s706 + $0x7c] sm:$0xf]
        %v740 = vunpack.c.l.b16 %v705
        %v741 = vunpack.c.h.b16 %v705
        %v742 = vpack.c.b16 %v740, %v740
        %v743 = vpack.c.b16 %v741, %v741
        %v778 = vunpack.c.l.b16 %v707
        %v779 = vunpack.c.l.b16 %v708
        %v780 = vunpack.c.l.b16 %v709
        %v781 = vunpack.c.l.b16 %v710
        %v782 = vunpack.c.l.b16 %v711
        %v783 = vunpack.c.l.b16 %v712
        %v784 = vunpack.c.l.b16 %v713
        %v785 = vunpack.c.l.b16 %v714
        %v786 = vunpack.c.l.b16 %v715
        %v787 = vunpack.c.l.b16 %v716
        %v788 = vunpack.c.l.b16 %v717
        %v789 = vunpack.c.l.b16 %v718
        %v790 = vunpack.c.l.b16 %v719
        %v791 = vunpack.c.l.b16 %v720
        %v792 = vunpack.c.l.b16 %v721
        %v793 = vunpack.c.l.b16 %v722
        %v794 = vunpack.c.l.b16 %v723
        %v795 = vunpack.c.l.b16 %v724
        %v796 = vunpack.c.l.b16 %v725
        %v797 = vunpack.c.l.b16 %v726
        %v798 = vunpack.c.l.b16 %v727
        %v799 = vunpack.c.l.b16 %v728
        %v800 = vunpack.c.l.b16 %v729
        %v801 = vunpack.c.l.b16 %v730
        %v802 = vunpack.c.l.b16 %v731
        %v803 = vunpack.c.l.b16 %v732
        %v804 = vunpack.c.l.b16 %v733
        %v805 = vunpack.c.l.b16 %v734
        %v806 = vunpack.c.l.b16 %v735
        %v807 = vunpack.c.l.b16 %v736
        %v808 = vunpack.c.l.b16 %v737
        %v809 = vunpack.c.l.b16 %v738
        %v810 = vpack.c.b16 %v779, %v778
        %v811 = vpack.c.b16 %v781, %v780
        %v812 = vpack.c.b16 %v783, %v782
        %v813 = vpack.c.b16 %v785, %v784
        %v814 = vpack.c.b16 %v787, %v786
        %v815 = vpack.c.b16 %v789, %v788
        %v816 = vpack.c.b16 %v791, %v790
        %v817 = vpack.c.b16 %v793, %v792
        %v818 = vpack.c.b16 %v795, %v794
        %v819 = vpack.c.b16 %v797, %v796
        %v820 = vpack.c.b16 %v799, %v798
        %v821 = vpack.c.b16 %v801, %v800
        %v822 = vpack.c.b16 %v803, %v802
        %v823 = vpack.c.b16 %v805, %v804
        %v824 = vpack.c.b16 %v807, %v806
        %v825 = vpack.c.b16 %v809, %v808
        %842 = vmatprep.subr.bf16.mxu0 0
        %843 = vmatpush1.bf16.msra.mxu0 %v810
        %844 = vmatprep.subr.bf16.mxu0 0
        %845 = vmatpush1.bf16.msra.mxu0 %v811
        %846 = vmatprep.subr.bf16.mxu0 0
        %847 = vmatpush1.bf16.msra.mxu0 %v812
        %848 = vmatprep.subr.bf16.mxu0 0
        %849 = vmatpush1.bf16.msra.mxu0 %v813
        %850 = vmatprep.subr.bf16.mxu0 0
        %851 = vmatpush1.bf16.msra.mxu0 %v814
        %852 = vmatprep.subr.bf16.mxu0 0
        %853 = vmatpush1.bf16.msra.mxu0 %v815
        %854 = vmatprep.subr.bf16.mxu0 0
        %855 = vmatpush1.bf16.msra.mxu0 %v816
        %856 = vmatprep.subr.bf16.mxu0 0
        %857 = vmatpush1.bf16.msra.mxu0 %v817
        %858 = vmatprep.subr.bf16.mxu0 0
        %859 = vmatpush1.bf16.msra.mxu0 %v818
        %860 = vmatprep.subr.bf16.mxu0 0
        %861 = vmatpush1.bf16.msra.mxu0 %v819
        %862 = vmatprep.subr.bf16.mxu0 0
        %863 = vmatpush1.bf16.msra.mxu0 %v820
        %864 = vmatprep.subr.bf16.mxu0 0
        %865 = vmatpush1.bf16.msra.mxu0 %v821
        %866 = vmatprep.subr.bf16.mxu0 0
        %867 = vmatpush1.bf16.msra.mxu0 %v822
        %868 = vmatprep.subr.bf16.mxu0 0
        %869 = vmatpush1.bf16.msra.mxu0 %v823
        %870 = vmatprep.subr.bf16.mxu0 0
        %871 = vmatpush1.bf16.msra.mxu0 %v824
        %872 = vmatprep.subr.bf16.mxu0 0
        %873 = vmatpush1.bf16.msra.mxu0 %v825
        %874 = vmatprep.mubr.bf16.mxu0 %v743
        %875 = vmatmul.mubr.bf16.gmra.mrb[0].mxu0 %v742
        %v876 = vpop.f32.mrb[0].mxu0
        %v877 = vadd.f32 0.0, %v876
        %v878 = vpop.f32.mrb[0].mxu0
        %v879 = vpop.f32.mrb[0].mxu0
        %v880 = vpop.f32.mrb[0].mxu0
        %881 = vdwg.mxu0
        %v882 = vadd.f32 %v703, %v877
        %vm883 = vcmask 130048
        %884 = vst.msk [vmem:[%s160] sm:$0xff] %vm883, %v882
        %s885 = sand.u32 %s87, 1
        %s886 = scalar_lea.sflag [#allocation3], %s885
        %s887 = sand.u32 %s87, 1
        %s888 = smul.addr %s887, 8
        %s889 = scalar_lea.vmem [#allocation2], %s888
        // Predicated region
        $region29: #{tpu_custom_call.1} parent=27 // pred_check
          %p890 = pneg %p97
        $region30: #{tpu_custom_call.1} parent=27 // pred_check_branch
          %892 = sbr.rel (%p890) target = $region32
        $region31: #{tpu_custom_call.1} parent=27 // pred_region
          %s894 = ssub.s32 128, 128
          %895 = vsyncadd %s886, %s894
          %s896 = sadd.s32 %s21, %s20
          %s897 = smul.addr %s896, 128
          %s898 = scalar_lea.hbm %s2, %s897
          %s900 = sshll.u32 %s889, 4
          %s901 = int_to_ptr.vmem [resolvable:$true] %s900
          %903 = dma.vmem_to_hbm [thread:$0]  %s901, 128, %s898, %s886
        $region32: #{tpu_custom_call.1} parent=27 // pred_fallthru
          _
      $region28: #{tpu_custom_call.1} parent=5 // pred_fallthru
        _
      %p904 = scmp.le.s32.totalorder 2, %s11
      // Predicated region
      $region33: #{tpu_custom_call.1} parent=5 // pred_check
        %p905 = pneg %p904
      $region34: #{tpu_custom_call.1} parent=5 // pred_check_branch
        %907 = sbr.rel (%p905) target = $region36
      $region35: #{tpu_custom_call.1} parent=5 // pred_region
        %s908 = ssub.s32 %s11, 2
        // Predicated region
        $region37: #{tpu_custom_call.1} parent=35 // pred_check
          %p909 = pneg %p103
        $region38: #{tpu_custom_call.1} parent=35 // pred_check_branch
          %911 = sbr.rel (%p909) target = $region40
        $region39: #{tpu_custom_call.1} parent=35 // pred_region
          %s912 = sand.u32 %s88, 1
          %s913 = scalar_lea.sflag [#allocation3], %s912
          %s914 = sand.u32 %s88, 1
          %s915 = smul.addr %s914, 8
          %s916 = scalar_lea.vmem [#allocation2], %s915
          %917 = dma.done %s913, 128
        $region40: #{tpu_custom_call.1} parent=35 // pred_fallthru
          _
      $region36: #{tpu_custom_call.1} parent=5 // pred_fallthru
        _
    $region6: #{tpu_custom_call.1} parent=1 // loop_footer
      %s15 = sadd.s32 1, %s11
    $region7: #{tpu_custom_call.1} parent=1 // loop_footer_branch
      %10 = sbr.rel target = $region3
    $region8: #{tpu_custom_call.1} parent=1 // loop_exit
      _
    %918 = vsyncpa [#allocation3], 1
    %s919 = scalar_lea.sflag [#allocation3], 1
    %920 = vsyncpa %s919, 1

</llo_original>
